<compile_context>
chip_gen: v5e
topology: v5e:2x2
jax: 0.10.0
libtpu: 0.0.40
codegen_flags: <defaults>
</compile_context>

<pallas_src>
import jax
import jax.numpy as jnp
from jax.experimental import pallas as pl
from jax.experimental.pallas import tpu as pltpu


def _round_up(x, m):
    return (x + m - 1) // m * m


def _naive_cf_gather_kernel(ctx_ref, w_ref, b_ref, ids_ref, emb_ref, out_ref):
    # ctx_ref : (Dc, tb)     f32   (streamed, lane-dense)
    # w_ref   : (E, Dc)      f32   (VMEM-resident, native nn.Linear layout)
    # b_ref   : (E, 1)       f32   (VMEM-resident)
    # ids_ref : (1, tb)      int32 (streamed, lane-dense)
    # emb_ref : (E, n_pad)   f32   (VMEM-resident, transposed table, zero-padded cols)
    # out_ref : (1, tb)      f32   (streamed, lane-dense)
    ctx_vecs = (
        jnp.dot(
            w_ref[...].astype(jnp.bfloat16),
            ctx_ref[...].astype(jnp.bfloat16),
            preferred_element_type=jnp.float32,
        )
        + b_ref[...]
    )                                                           # (E, tb) f32

    n_pad = emb_ref.shape[1]
    tb = ids_ref.shape[1]
    # In-kernel embedding gather as (transposed) one-hot @ table on the MXU.
    # One-hot entries are exact 0/1 in bf16 and products accumulate in f32,
    # so this reproduces the bf16 table rows exactly.
    onehot_t = (
        ids_ref[...] == jax.lax.broadcasted_iota(jnp.int32, (n_pad, tb), 0)
    ).astype(jnp.bfloat16)                                      # (n_pad, tb)
    item_vecs = jnp.dot(
        emb_ref[...].astype(jnp.bfloat16),
        onehot_t,
        preferred_element_type=jnp.float32,
    )                                                           # (E, tb) f32

    # Elementwise multiply + sublane reduction over E -> lane-dense (1, tb).
    out_ref[...] = jnp.sum(ctx_vecs * item_vecs, axis=0, keepdims=True)


def _naive_cf_prelookup_kernel(ctx_ref, w_ref, b_ref, item_ref, out_ref):
    # Fallback for large vocabularies: item_ref is a pre-gathered, transposed
    # (E, tb) f32 slab produced by a wrapper-side jnp.take.
    ctx_vecs = (
        jnp.dot(
            w_ref[...].astype(jnp.bfloat16),
            ctx_ref[...].astype(jnp.bfloat16),
            preferred_element_type=jnp.float32,
        )
        + b_ref[...]
    )                                                           # (E, tb) f32
    out_ref[...] = jnp.sum(ctx_vecs * item_ref[...], axis=0, keepdims=True)


def naive_cf_forward(context, item_ids, weight, bias, emb_table,
                     block_b=None, max_resident_items=1024):
    """context: (B, Dc) f32; item_ids: (B,) int; weight: (E, Dc) (native
    nn.Linear layout); bias: (E,); emb_table: (n_items, E).  Returns (B,) f32."""
    B, Dc = context.shape
    E = weight.shape[0]
    n_items = emb_table.shape[0]

    # Keep the embedding lookup inside the kernel for modest vocabularies
    # (table stays VMEM-resident, one-hot @ table on the MXU); for larger
    # tables fall back to a wrapper-side gather.
    use_resident_table = n_items <= max_resident_items
    n_pad = _round_up(max(n_items, 1), 128)

    if block_b is None:
        # ~2.4 MiB of real HBM bytes per grid step at 72 B/row, well above
        # the ~0.35 us/step pipeline overhead.
        block_b = 32768
    if use_resident_table:
        # Bound the (n_pad, tb) bf16 one-hot intermediate to ~8 MiB.
        onehot_cap = (8 * 1024 * 1024) // (2 * n_pad)
        block_b = min(block_b, max(128, onehot_cap))

    # Batch tile lives on the lane axis: multiple of 128.
    tb = min(_round_up(B, 128), _round_up(block_b, 128))
    bp = _round_up(B, tb)
    grid = (bp // tb,)

    # Transposed, f32 streams (no wrapper bf16 pre-cast; cast happens in-kernel).
    ctx_t = jnp.transpose(context).astype(jnp.float32)          # (Dc, B)
    ids = item_ids.astype(jnp.int32).reshape(1, B)              # (1, B)
    if bp != B:
        ctx_t = jnp.pad(ctx_t, ((0, 0), (0, bp - B)))
        ids = jnp.pad(ids, ((0, 0), (0, bp - B)))               # pad with valid id 0

    w = weight.astype(jnp.float32)                              # (E, Dc), resident
    b2 = bias.reshape(E, 1).astype(jnp.float32)                 # (E, 1),  resident

    compiler_params = pltpu.CompilerParams(
        dimension_semantics=("parallel",),   # shard B-tiles across TCs on v7x
        vmem_limit_bytes=48 * 1024 * 1024,   # > scoped defaults, < v7x 64 MiB physical
    )

    if use_resident_table:
        emb_t = jnp.transpose(emb_table).astype(jnp.float32)    # (E, n_items)
        if n_pad != n_items:
            emb_t = jnp.pad(emb_t, ((0, 0), (0, n_pad - n_items)))

        out = pl.pallas_call(
            _naive_cf_gather_kernel,
            out_shape=jax.ShapeDtypeStruct((1, bp), jnp.float32),
            grid=grid,
            in_specs=[
                pl.BlockSpec((Dc, tb), lambda i: (0, i)),       # context (streamed)
                pl.BlockSpec((E, Dc), lambda i: (0, 0)),        # W (resident)
                pl.BlockSpec((E, 1), lambda i: (0, 0)),         # bias (resident)
                pl.BlockSpec((1, tb), lambda i: (0, i)),        # item ids (streamed)
                pl.BlockSpec((E, n_pad), lambda i: (0, 0)),     # emb table (resident)
            ],
            out_specs=pl.BlockSpec((1, tb), lambda i: (0, i)),
            compiler_params=compiler_params,
        )(ctx_t, w, b2, ids, emb_t)
    else:
        # TODO(synk): for very large tables, replace this HBM round-trip with an
        # in-kernel DMA gather (ids scalar-prefetched to SMEM, emb_table in
        # pl.ANY, make_async_copy per row into a double-buffered VMEM slab).
        item_t = jnp.transpose(
            jnp.take(emb_table, item_ids, axis=0)
        ).astype(jnp.float32)                                   # (E, B)
        if bp != B:
            item_t = jnp.pad(item_t, ((0, 0), (0, bp - B)))

        out = pl.pallas_call(
            _naive_cf_prelookup_kernel,
            out_shape=jax.ShapeDtypeStruct((1, bp), jnp.float32),
            grid=grid,
            in_specs=[
                pl.BlockSpec((Dc, tb), lambda i: (0, i)),       # context (streamed)
                pl.BlockSpec((E, Dc), lambda i: (0, 0)),        # W (resident)
                pl.BlockSpec((E, 1), lambda i: (0, 0)),         # bias (resident)
                pl.BlockSpec((E, tb), lambda i: (0, i)),        # item vecs (streamed)
            ],
            out_specs=pl.BlockSpec((1, tb), lambda i: (0, i)),
            compiler_params=compiler_params,
        )(ctx_t, w, b2, item_t)

    return out[0, :B]                                           # (B,)


if __name__ == "__main__":
    # Small, deterministic problem sizes consistent with the module.
    B, dim_context, n_items, emb_dim = 8, 16, 10, 32

    key = jax.random.PRNGKey(0)
    k_ctx, k_w, k_b, k_emb, k_ids = jax.random.split(key, 5)

    context = jax.random.normal(k_ctx, (B, dim_context), dtype=jnp.float32)
    item_ids = jax.random.randint(k_ids, (B,), 0, n_items, dtype=jnp.int32)

    # nn.Linear stores weight as (emb_dim, dim_context); the kernel consumes
    # that layout directly.
    weight = jax.random.normal(k_w, (emb_dim, dim_context), dtype=jnp.float32) * 0.1
    bias = jax.random.normal(k_b, (emb_dim,), dtype=jnp.float32) * 0.1
    emb_table = jax.random.normal(k_emb, (n_items, emb_dim), dtype=jnp.float32) * 0.1

    # --- Resident-table (in-kernel gather) path -----------------------------
    out = naive_cf_forward(context, item_ids, weight, bias, emb_table)
    out = jax.block_until_ready(out)
    assert out.shape == (B,)

    # Reference with matching bf16 casts (kernel casts matmul operands and the
    # resident table to bf16 inside the kernel, accumulates in f32).
    ctx_bf = context.astype(jnp.bfloat16)
    w_bf = weight.astype(jnp.bfloat16)
    ctx_vecs_ref = jnp.dot(ctx_bf, w_bf.T, preferred_element_type=jnp.float32) + bias
    ref = jnp.sum(
        ctx_vecs_ref
        * jnp.take(emb_table.astype(jnp.bfloat16), item_ids, axis=0).astype(jnp.float32),
        axis=1,
    )
    assert jnp.allclose(out, ref, atol=1e-3, rtol=1e-3), (out, ref)

    # Sanity vs. full-f32 reference (difference is bf16 rounding only).
    ref_f32 = jnp.sum(
        (context @ weight.T + bias) * jnp.take(emb_table, item_ids, axis=0), axis=1
    )
    assert jnp.allclose(out, ref_f32, atol=5e-2, rtol=5e-2), (out, ref_f32)

    # --- Large-vocab fallback (pre-gathered item slab) path -----------------
    out_pre = naive_cf_forward(context, item_ids, weight, bias, emb_table,
                               max_resident_items=0)
    out_pre = jax.block_until_ready(out_pre)
    ref_pre = jnp.sum(
        ctx_vecs_ref * jnp.take(emb_table, item_ids, axis=0), axis=1
    )
    assert out_pre.shape == (B,)
    assert jnp.allclose(out_pre, ref_pre, atol=1e-3, rtol=1e-3), (out_pre, ref_pre)
    assert jnp.allclose(out_pre, ref_f32, atol=5e-2, rtol=5e-2), (out_pre, ref_f32)

    print("KERNEL_OK")
</pallas_src>

<mosaic_0001>
module attributes {stable_mosaic.version = 11 : i64} {
  func.func @_naive_cf_gather_kernel(%arg0: i32, %arg1: memref<16x128xf32, #tpu.memory_space<vmem>>, %arg2: memref<32x16xf32, #tpu.memory_space<vmem>>, %arg3: memref<32x1xf32, #tpu.memory_space<vmem>>, %arg4: memref<1x128xi32, #tpu.memory_space<vmem>>, %arg5: memref<32x128xf32, #tpu.memory_space<vmem>>, %arg6: memref<1x128xf32, #tpu.memory_space<vmem>>) attributes {dimension_semantics = [#tpu.dimension_semantics<parallel>], iteration_bounds = array<i64: 1>, scalar_prefetch = 0 : i64, scratch_operands = 0 : i64, tpu.core_type = #tpu.core_type<tc>, window_params = [{transform_indices = @transform_0, window_bounds = array<i64: 16, 128>}, {pipeline_mode = #tpu.pipeline_mode<synchronous>, transform_indices = @transform_1, window_bounds = array<i64: 32, 16>}, {pipeline_mode = #tpu.pipeline_mode<synchronous>, transform_indices = @transform_2, window_bounds = array<i64: 32, 1>}, {transform_indices = @transform_3, window_bounds = array<i64: 1, 128>}, {pipeline_mode = #tpu.pipeline_mode<synchronous>, transform_indices = @transform_4, window_bounds = array<i64: 32, 128>}, {transform_indices = @transform_5, window_bounds = array<i64: 1, 128>}]} {
    %c0 = arith.constant 0 : index
    %c0_0 = arith.constant 0 : index
    %0 = vector.load %arg2[%c0, %c0_0] : memref<32x16xf32, #tpu.memory_space<vmem>>, vector<32x16xf32>
    %1 = arith.truncf %0 : vector<32x16xf32> to vector<32x16xbf16>
    %c0_1 = arith.constant 0 : index
    %c0_2 = arith.constant 0 : index
    %2 = vector.load %arg1[%c0_1, %c0_2] : memref<16x128xf32, #tpu.memory_space<vmem>>, vector<16x128xf32>
    %3 = arith.truncf %2 : vector<16x128xf32> to vector<16x128xbf16>
    %cst = arith.constant dense<0.000000e+00> : vector<32x128xf32>
    %4 = tpu.matmul %1, %3, %cst {dimension_numbers = #tpu.dot_dimension_numbers<[1], [0], [0], [1], [0, 0, 1, 1], [], []>} : vector<32x16xbf16>, vector<16x128xbf16>, vector<32x128xf32> -> vector<32x128xf32>
    %c0_3 = arith.constant 0 : index
    %c0_4 = arith.constant 0 : index
    %5 = vector.load %arg3[%c0_3, %c0_4] : memref<32x1xf32, #tpu.memory_space<vmem>>, vector<32x1xf32>
    %6 = vector.broadcast %5 : vector<32x1xf32> to vector<32x128xf32>
    %7 = arith.addf %4, %6 : vector<32x128xf32>
    %c0_5 = arith.constant 0 : index
    %c0_6 = arith.constant 0 : index
    %8 = vector.load %arg4[%c0_5, %c0_6] : memref<1x128xi32, #tpu.memory_space<vmem>>, vector<1x128xi32>
    %9 = tpu.iota {dimensions = array<i32: 0>} : vector<128x128xi32>
    %10 = vector.broadcast %8 : vector<1x128xi32> to vector<128x128xi32>
    %11 = arith.cmpi eq, %10, %9 : vector<128x128xi32>
    %12 = arith.extui %11 : vector<128x128xi1> to vector<128x128xi32>
    %13 = arith.sitofp %12 : vector<128x128xi32> to vector<128x128xf32>
    %14 = arith.truncf %13 : vector<128x128xf32> to vector<128x128xbf16>
    %c0_7 = arith.constant 0 : index
    %c0_8 = arith.constant 0 : index
    %15 = vector.load %arg5[%c0_7, %c0_8] : memref<32x128xf32, #tpu.memory_space<vmem>>, vector<32x128xf32>
    %16 = arith.truncf %15 : vector<32x128xf32> to vector<32x128xbf16>
    %cst_9 = arith.constant dense<0.000000e+00> : vector<32x128xf32>
    %17 = tpu.matmul %16, %14, %cst_9 {dimension_numbers = #tpu.dot_dimension_numbers<[1], [0], [0], [1], [0, 0, 1, 1], [], []>} : vector<32x128xbf16>, vector<128x128xbf16>, vector<32x128xf32> -> vector<32x128xf32>
    %18 = arith.mulf %7, %17 : vector<32x128xf32>
    %cst_10 = arith.constant dense<0.000000e+00> : vector<128xf32>
    %19 = vector.multi_reduction <add>, %18, %cst_10 [0] : vector<32x128xf32> to vector<128xf32>
    %20 = vector.shape_cast %19 : vector<128xf32> to vector<1x128xf32>
    %c0_11 = arith.constant 0 : index
    %c0_12 = arith.constant 0 : index
    %21 = vector.load %arg6[%c0_11, %c0_12] : memref<1x128xf32, #tpu.memory_space<vmem>>, vector<1x128xf32>
    tpu.vector_store %arg6[%c0_11, %c0_12], %20 {strides = array<i32>} : memref<1x128xf32, #tpu.memory_space<vmem>>, vector<1x128xf32>,
    return
  }
  func.func @transform_0(%arg0: i32) -> (i32, i32) {
    %c0_i32 = arith.constant 0 : i32
    %c0_i32_0 = arith.constant 0 : i32
    return %c0_i32, %arg0 : i32, i32
  }
  func.func @transform_1(%arg0: i32) -> (i32, i32) {
    %c0_i32 = arith.constant 0 : i32
    %c0_i32_0 = arith.constant 0 : i32
    %c0_i32_1 = arith.constant 0 : i32
    return %c0_i32, %c0_i32_0 : i32, i32
  }
  func.func @transform_2(%arg0: i32) -> (i32, i32) {
    %c0_i32 = arith.constant 0 : i32
    %c0_i32_0 = arith.constant 0 : i32
    %c0_i32_1 = arith.constant 0 : i32
    return %c0_i32, %c0_i32_0 : i32, i32
  }
  func.func @transform_3(%arg0: i32) -> (i32, i32) {
    %c0_i32 = arith.constant 0 : i32
    %c0_i32_0 = arith.constant 0 : i32
    return %c0_i32, %arg0 : i32, i32
  }
  func.func @transform_4(%arg0: i32) -> (i32, i32) {
    %c0_i32 = arith.constant 0 : i32
    %c0_i32_0 = arith.constant 0 : i32
    %c0_i32_1 = arith.constant 0 : i32
    return %c0_i32, %c0_i32_0 : i32, i32
  }
  func.func @transform_5(%arg0: i32) -> (i32, i32) {
    %c0_i32 = arith.constant 0 : i32
    %c0_i32_0 = arith.constant 0 : i32
    return %c0_i32, %arg0 : i32, i32
  }
}

</mosaic_0001>

<llo_original>
// kernel: tpu_custom_call.1
$region0: #{tpu_custom_call.1}
  #allocation0 [shape = 'u32[]', space=smem, size = 0x4, offset = 0x4, fixed_abs, tag = 'smem constant byte address 0x4 - core index']
  #allocation1 [shape = 'u32[72,128]{1,0:T(1,128)}', space=vmem, size = 0x9000, scoped, tag = 'internal scratch']
  %s0 = inlined_call_operand.vmem [shape: f32[16,128], index: 0, kind: input, shape index: {}]
  %s1 = inlined_call_operand.vmem [shape: f32[32,16], index: 1, kind: input, shape index: {}]
  %s2 = inlined_call_operand.vmem [shape: f32[32,1], index: 2, kind: input, shape index: {}]
  %s3 = inlined_call_operand.vmem [shape: s32[1,128], index: 3, kind: input, shape index: {}]
  %s4 = inlined_call_operand.vmem [shape: f32[32,128], index: 4, kind: input, shape index: {}]
  %s5 = inlined_call_operand.hbm [shape: f32[1,128], index: 5, kind: output, shape index: {}]
  %s6 = sld [smem:[#allocation0]]
  $region30: #{tpu_custom_call.1} parent=0
    _
  %s8 = ssub.s32 1, %s6
  %s9 = scalar_select 0, %s8, %s6
  $region1: #{tpu_custom_call.1} parent=0
    #allocation2 [shape = 'u8[512]{0}', space=vmem, size = 0x400, scoped, tag = 'output window, operand 0, single buffered']
    #allocation3 [shape = 's32[1]{0}', space=sflag, size = 0x4, scoped, tag = 'scoped memory for tpu_custom_call.1']
    %10 = vsyncpa [#allocation3], 0
    // Predicated region
    $region2: #{tpu_custom_call.1} parent=1 // pred_check
      _
    $region3: #{tpu_custom_call.1} parent=1 // pred_check_branch
      %12 = sbr.rel (0) target = $region5
    $region4: #{tpu_custom_call.1} parent=1 // pred_region
      _
    $region5: #{tpu_custom_call.1} parent=1 // pred_fallthru
      _
    // Predicated region
    $region6: #{tpu_custom_call.1} parent=1 // pred_check
      _
    $region7: #{tpu_custom_call.1} parent=1 // pred_check_branch
      %14 = sbr.rel (0) target = $region9
    $region8: #{tpu_custom_call.1} parent=1 // pred_region
      _
    $region9: #{tpu_custom_call.1} parent=1 // pred_fallthru
      _
    // Predicated region
    $region10: #{tpu_custom_call.1} parent=1 // pred_check
      _
    $region11: #{tpu_custom_call.1} parent=1 // pred_check_branch
      %16 = sbr.rel (0) target = $region13
    $region12: #{tpu_custom_call.1} parent=1 // pred_region
      _
    $region13: #{tpu_custom_call.1} parent=1 // pred_fallthru
      _
    // Predicated region
    $region14: #{tpu_custom_call.1} parent=1 // pred_check
      _
    $region15: #{tpu_custom_call.1} parent=1 // pred_check_branch
      %18 = sbr.rel (0) target = $region17
    $region16: #{tpu_custom_call.1} parent=1 // pred_region
      _
    $region17: #{tpu_custom_call.1} parent=1 // pred_fallthru
      _
    // Predicated region
    $region18: #{tpu_custom_call.1} parent=1 // pred_check
      _
    $region19: #{tpu_custom_call.1} parent=1 // pred_check_branch
      %20 = sbr.rel (0) target = $region21
    $region20: #{tpu_custom_call.1} parent=1 // pred_region
      _
    $region21: #{tpu_custom_call.1} parent=1 // pred_fallthru
      _
    %v22 = vld [vmem:[%s1] sm:$0xff]
    %v23 = vld [vmem:[%s1 + $0x8] sm:$0xff]
    %v24 = vld [vmem:[%s1 + $0x10] sm:$0xff]
    %v25 = vld [vmem:[%s1 + $0x18] sm:$0xff]
    %v26 = vpack.c.bf16 %v23, %v22
    %v27 = vpack.c.bf16 %v25, %v24
    %v28 = vld [vmem:[%s0] sm:$0xff]
    %v29 = vld [vmem:[%s0 + $0x8] sm:$0xff]
    %v30 = vpack.c.bf16 %v29, %v28
    %v31 = vld [vmem:[%s2] sm:$0xff]
    %v32 = vld [vmem:[%s2 + $0x8] sm:$0xff]
    %v33 = vld [vmem:[%s2 + $0x10] sm:$0xff]
    %v34 = vld [vmem:[%s2 + $0x18] sm:$0xff]
    %36 = vset.pattern.permute.xlu0 0
    %37 = vperm.xlu0 %36, %v31
    %v38 = vpop.permute.xlu0 %37
    %41 = vset.pattern.permute.xlu0 0
    %42 = vperm.xlu0 %41, %v32
    %v43 = vpop.permute.xlu0 %42
    %46 = vset.pattern.permute.xlu0 0
    %47 = vperm.xlu0 %46, %v33
    %v48 = vpop.permute.xlu0 %47
    %51 = vset.pattern.permute.xlu0 0
    %52 = vperm.xlu0 %51, %v34
    %v53 = vpop.permute.xlu0 %52
    %vm55 = vcmask 130048
    %v57 = vsel %vm55, %v26, 0
    %v60 = vsel %vm55, %v27, 0
    %62 = vmatpush.bf16.msra.mxu0 0
    %63 = vmatpush.bf16.msra.mxu0 0
    %64 = vmatpush.bf16.msra.mxu0 0
    %65 = vmatpush.bf16.msra.mxu0 0
    %66 = vmatpush.bf16.msra.mxu0 0
    %67 = vmatpush.bf16.msra.mxu0 0
    %68 = vmatpush.bf16.msra.mxu0 0
    %69 = vmatpush.bf16.msra.mxu0 %v30
    %70 = vmatmul.bf16.gmra.mxu0 %v57
    %v71 = vpop.f32.mrf.mxu0
    %v72 = vadd.f32 %v38, %v71
    %v73 = vpop.f32.mrf.mxu0
    %v74 = vadd.f32 %v43, %v73
    %75 = vmatmul.bf16.gmra.mxu0 %v60
    %v76 = vpop.f32.mrf.mxu0
    %v77 = vadd.f32 %v48, %v76
    %v78 = vpop.f32.mrf.mxu0
    %v79 = vadd.f32 %v53, %v78
    %80 = vdwg.mxu0
    %v81 = vld [vmem:[%s3] sm:$0x1]
    %v82 = vlaneseq
    %v83 = vshrl.u32 %v82, 7
    %v84 = vadd.s32 %v83, 8
    %v85 = vadd.s32 %v83, 16
    %v86 = vadd.s32 %v83, 24
    %v87 = vadd.s32 %v83, 32
    %v88 = vadd.s32 %v83, 40
    %v89 = vadd.s32 %v83, 48
    %v90 = vadd.s32 %v83, 56
    %v91 = vadd.s32 %v83, 64
    %v92 = vadd.s32 %v83, 72
    %v93 = vadd.s32 %v83, 80
    %v94 = vadd.s32 %v83, 88
    %v95 = vadd.s32 %v83, 96
    %v96 = vadd.s32 %v83, 104
    %v97 = vadd.s32 %v83, 112
    %v98 = vadd.s32 %v83, 120
    %v99 = vperm.slane %v81, 0
    %vm100 = vcmp.eq.s32.totalorder %v99, %v83
    %vm101 = vcmp.eq.s32.totalorder %v99, %v84
    %vm102 = vcmp.eq.s32.totalorder %v99, %v85
    %vm103 = vcmp.eq.s32.totalorder %v99, %v86
    %vm104 = vcmp.eq.s32.totalorder %v99, %v87
    %vm105 = vcmp.eq.s32.totalorder %v99, %v88
    %vm106 = vcmp.eq.s32.totalorder %v99, %v89
    %vm107 = vcmp.eq.s32.totalorder %v99, %v90
    %vm108 = vcmp.eq.s32.totalorder %v99, %v91
    %vm109 = vcmp.eq.s32.totalorder %v99, %v92
    %vm110 = vcmp.eq.s32.totalorder %v99, %v93
    %vm111 = vcmp.eq.s32.totalorder %v99, %v94
    %vm112 = vcmp.eq.s32.totalorder %v99, %v95
    %vm113 = vcmp.eq.s32.totalorder %v99, %v96
    %vm114 = vcmp.eq.s32.totalorder %v99, %v97
    %vm115 = vcmp.eq.s32.totalorder %v99, %v98
    %v116 = vsel %vm100, 1, 0
    %v117 = vsel %vm101, 1, 0
    %v118 = vsel %vm102, 1, 0
    %v119 = vsel %vm103, 1, 0
    %v120 = vsel %vm104, 1, 0
    %v121 = vsel %vm105, 1, 0
    %v122 = vsel %vm106, 1, 0
    %v123 = vsel %vm107, 1, 0
    %v124 = vsel %vm108, 1, 0
    %v125 = vsel %vm109, 1, 0
    %v126 = vsel %vm110, 1, 0
    %v127 = vsel %vm111, 1, 0
    %v128 = vsel %vm112, 1, 0
    %v129 = vsel %vm113, 1, 0
    %v130 = vsel %vm114, 1, 0
    %v131 = vsel %vm115, 1, 0
    %v132 = vcvt.s32.f32 %v116
    %v133 = vcvt.s32.f32 %v117
    %v134 = vcvt.s32.f32 %v118
    %v135 = vcvt.s32.f32 %v119
    %v136 = vcvt.s32.f32 %v120
    %v137 = vcvt.s32.f32 %v121
    %v138 = vcvt.s32.f32 %v122
    %v139 = vcvt.s32.f32 %v123
    %v140 = vcvt.s32.f32 %v124
    %v141 = vcvt.s32.f32 %v125
    %v142 = vcvt.s32.f32 %v126
    %v143 = vcvt.s32.f32 %v127
    %v144 = vcvt.s32.f32 %v128
    %v145 = vcvt.s32.f32 %v129
    %v146 = vcvt.s32.f32 %v130
    %v147 = vcvt.s32.f32 %v131
    %v148 = vpack.c.bf16 %v133, %v132
    %v149 = vpack.c.bf16 %v135, %v134
    %v150 = vpack.c.bf16 %v137, %v136
    %v151 = vpack.c.bf16 %v139, %v138
    %v152 = vpack.c.bf16 %v141, %v140
    %v153 = vpack.c.bf16 %v143, %v142
    %v154 = vpack.c.bf16 %v145, %v144
    %v155 = vpack.c.bf16 %v147, %v146
    %v156 = vld [vmem:[%s4] sm:$0xff]
    %v157 = vld [vmem:[%s4 + $0x8] sm:$0xff]
    %v158 = vld [vmem:[%s4 + $0x10] sm:$0xff]
    %v159 = vld [vmem:[%s4 + $0x18] sm:$0xff]
    %v160 = vpack.c.bf16 %v157, %v156
    %v161 = vpack.c.bf16 %v159, %v158
    %162 = vmatpush.bf16.msra.mxu0 %v155
    %163 = vmatpush.bf16.msra.mxu0 %v154
    %164 = vmatpush.bf16.msra.mxu0 %v153
    %165 = vmatpush.bf16.msra.mxu0 %v152
    %166 = vmatpush.bf16.msra.mxu0 %v151
    %167 = vmatpush.bf16.msra.mxu0 %v150
    %168 = vmatpush.bf16.msra.mxu0 %v149
    %169 = vmatpush.bf16.msra.mxu0 %v148
    %170 = vmatmul.bf16.gmra.mxu0 %v160
    %v171 = vpop.f32.mrf.mxu0
    %v172 = vadd.f32 0.0, %v171
    %v173 = vpop.f32.mrf.mxu0
    %v174 = vadd.f32 0.0, %v173
    %175 = vmatmul.bf16.gmra.mxu0 %v161
    %v176 = vpop.f32.mrf.mxu0
    %v177 = vadd.f32 0.0, %v176
    %v178 = vpop.f32.mrf.mxu0
    %v179 = vadd.f32 0.0, %v178
    %180 = vdwg.mxu0
    %v181 = vmul.f32 %v72, %v172
    %v182 = vmul.f32 %v74, %v174
    %v183 = vmul.f32 %v77, %v177
    %v184 = vmul.f32 %v79, %v179
    %v185 = vadd.f32 %v181, %v182
    %v186 = vadd.f32 %v185, %v183
    %v187 = vadd.f32 %v186, %v184
    %v188 = vrot.slane %v187, 4
    %v189 = vadd.f32 %v187, %v188
    %v190 = vrot.slane %v189, 2
    %v191 = vadd.f32 %v189, %v190
    %v192 = vrot.slane %v191, 1
    %v193 = vadd.f32 %v191, %v192
    %194 = vst [vmem:[#allocation2] sm:$0x1] %v193
    // Predicated region
    $region22: #{tpu_custom_call.1} parent=1 // pred_check
      _
    $region23: #{tpu_custom_call.1} parent=1 // pred_check_branch
      %196 = sbr.rel (0) target = $region25
    $region24: #{tpu_custom_call.1} parent=1 // pred_region
      %198 = vsyncadd [#allocation3], 0
      %s200 = sshll.u32 [#allocation2], 4
      %s201 = int_to_ptr.vmem [resolvable:$true] %s200
      %s202 = sshll.u32 %s5, 4
      %s203 = int_to_ptr.hbm [resolvable:$true] %s202
      %205 = dma.vmem_to_hbm [thread:$0]  %s201, 16, %s203, [#allocation3]
    $region25: #{tpu_custom_call.1} parent=1 // pred_fallthru
      _
    // Predicated region
    $region26: #{tpu_custom_call.1} parent=1 // pred_check
      _
    $region27: #{tpu_custom_call.1} parent=1 // pred_check_branch
      %207 = sbr.rel (0) target = $region29
    $region28: #{tpu_custom_call.1} parent=1 // pred_region
      %209 = dma.done [#allocation3], 16
    $region29: #{tpu_custom_call.1} parent=1 // pred_fallthru
      _
    %210 = vsyncpa [#allocation3], 1

</llo_original>
